<compile_context>
chip_gen: v7x
topology: tpu7x:2x2x1
jax: 0.10.0
libtpu: 0.0.40
codegen_flags: <defaults>
</compile_context>

<pallas_src>
import jax
import jax.numpy as jnp
from jax.experimental import pallas as pl
from jax.experimental.pallas import tpu as pltpu

C_LABEL = 3
C_DOMAIN = 2
D_IN = 310
D_PAD = 384           # 310 padded to 3*128 lanes (zero-padded cols are inert)
D_HID = 128
D_FUSE = 2 * D_HID    # 256: fused label|domain width
OUT_PAD = 128         # lane-dense output slab; cols [0:3]=label, [3:5]=domain
BN_EPS = 1e-5


def dann_kernel(x_ref, w1_ref, b1_ref, wf2_ref, wp12_ref, wp3_ref, bias_ref, out_ref):
    # x is already BN-folded (scale/shift baked into w1/b1), zero-padded, bf16.
    x = x_ref[...]                                                  # (TB, 384) bf16

    # ---- feature extractor (bf16 matmuls, f32 accumulate) ----
    h = jnp.dot(x, w1_ref[...], preferred_element_type=jnp.float32) + b1_ref[...]
    h = jnp.maximum(h, 0.0)
    h = jnp.dot(h.astype(jnp.bfloat16), wf2_ref[...],
                preferred_element_type=jnp.float32) + bias_ref[0:1, 0:D_HID]
    feats = jnp.maximum(h, 0.0)                                     # (TB, 128) f32

    # ---- fused label|domain predictors (ReverseLayer is identity in forward) ----
    w_p1 = wp12_ref[0:D_HID, :]                                     # (128, 256) bf16
    w_p2 = wp12_ref[D_HID:D_HID + D_FUSE, :]                        # (256, 256) bf16 block-diag

    p = jnp.dot(feats.astype(jnp.bfloat16), w_p1,
                preferred_element_type=jnp.float32) + bias_ref[1:2, :]
    p = jnp.maximum(p, 0.0)
    p = jnp.dot(p.astype(jnp.bfloat16), w_p2,
                preferred_element_type=jnp.float32) + bias_ref[2:3, :]
    p = jnp.maximum(p, 0.0)
    out_ref[...] = jnp.dot(p.astype(jnp.bfloat16), wp3_ref[...],
                           preferred_element_type=jnp.float32) + bias_ref[3:4, 0:OUT_PAD]


def pack_static_params(params):
    """One-time packing of batch-independent parameter slabs (hoisted out of the
    per-call jitted path)."""
    (bn_gamma, bn_beta,
     w_f1, b_f1, w_f2, b_f2,
     w_l1, b_l1, w_l2, b_l2, w_l3, b_l3,
     w_d1, b_d1, w_d2, b_d2, w_d3, b_d3) = params

    w_f2_bf = w_f2.astype(jnp.bfloat16)                              # (128, 128)

    # fused predictor layers 1+2: (128+256, 256) bf16
    w_p1 = jnp.concatenate([w_l1, w_d1], axis=1)                     # (128, 256)
    z = jnp.zeros((D_HID, D_HID), jnp.float32)
    w_p2 = jnp.block([[w_l2, z], [z, w_d2]])                         # (256, 256)
    w_p12_bf = jnp.concatenate([w_p1, w_p2], axis=0).astype(jnp.bfloat16)

    # fused predictor layer 3: (256, 128) bf16, lane-dense output slab
    w_p3 = jnp.zeros((D_FUSE, OUT_PAD), jnp.float32)
    w_p3 = w_p3.at[:D_HID, :C_LABEL].set(w_l3)
    w_p3 = w_p3.at[D_HID:, C_LABEL:C_LABEL + C_DOMAIN].set(w_d3)
    w_p3_bf = w_p3.astype(jnp.bfloat16)

    # batch-independent biases in one (4, 256) f32 slab (added post-matmul in f32)
    bias_pack = jnp.zeros((4, D_FUSE), jnp.float32)
    bias_pack = bias_pack.at[0, :D_HID].set(b_f2.reshape(-1))
    bias_pack = bias_pack.at[1, :D_HID].set(b_l1.reshape(-1))
    bias_pack = bias_pack.at[1, D_HID:].set(b_d1.reshape(-1))
    bias_pack = bias_pack.at[2, :D_HID].set(b_l2.reshape(-1))
    bias_pack = bias_pack.at[2, D_HID:].set(b_d2.reshape(-1))
    bias_pack = bias_pack.at[3, :C_LABEL].set(b_l3.reshape(-1))
    bias_pack = bias_pack.at[3, C_LABEL:C_LABEL + C_DOMAIN].set(b_d3.reshape(-1))

    return (bn_gamma.reshape(1, -1), bn_beta.reshape(1, -1),
            w_f1, b_f1.reshape(1, -1),
            w_f2_bf, w_p12_bf, w_p3_bf, bias_pack)


def _round_up(n, m):
    return ((n + m - 1) // m) * m


def _batch_tile(B):
    # 256 rows keeps the v6e/v7x 256x256 MXU M-dimension full and amortizes the
    # ~0.35 us/step grid overhead; small batches run as one step (multiple of 8).
    return 256 if B >= 256 else _round_up(B, 8)


@jax.jit
def dann_forward(x, packed):
    (bn_gamma, bn_beta, w_f1, b_f1,
     w_f2_bf, w_p12_bf, w_p3_bf, bias_pack) = packed

    B = x.shape[0]
    TB = _batch_tile(B)
    B_pad = _round_up(B, TB)
    num_tiles = B_pad // TB

    # ---- BatchNorm (training-mode batch stats, biased var) folded into layer 1 ----
    # Computed globally in the wrapper so batch tiles are independent (grid / v7x
    # megacore safe), then baked into w_f1 / b_f1.
    mean = jnp.mean(x, axis=0, keepdims=True)                        # (1, 310)
    var = jnp.mean(jnp.square(x - mean), axis=0, keepdims=True)      # biased
    scale = bn_gamma * jax.lax.rsqrt(var + BN_EPS)                   # (1, 310)
    shift = bn_beta - mean * scale
    w1_eff = scale.reshape(-1, 1) * w_f1                             # (310, 128)
    b1_eff = shift @ w_f1 + b_f1                                     # (1, 128) f32
    w1_bf = jnp.pad(w1_eff, ((0, D_PAD - D_IN), (0, 0))).astype(jnp.bfloat16)

    # Single fused pad + bf16 cast: no extra f32 round-trip of the padded batch.
    x_bf = jnp.pad(x, ((0, B_pad - B), (0, D_PAD - D_IN))).astype(jnp.bfloat16)

    out = pl.pallas_call(
        dann_kernel,
        out_shape=jax.ShapeDtypeStruct((B_pad, OUT_PAD), jnp.float32),
        grid=(num_tiles,),
        in_specs=[
            pl.BlockSpec((TB, D_PAD), lambda i: (i, 0)),             # x: tiled over batch
            pl.BlockSpec((D_PAD, D_HID), lambda i: (0, 0)),          # w1 (BN-folded)
            pl.BlockSpec((1, D_HID), lambda i: (0, 0)),              # b1 (BN-folded)
            pl.BlockSpec((D_HID, D_HID), lambda i: (0, 0)),          # w_f2
            pl.BlockSpec((D_HID + D_FUSE, D_FUSE), lambda i: (0, 0)),  # w_p1|w_p2
            pl.BlockSpec((D_FUSE, OUT_PAD), lambda i: (0, 0)),       # w_p3
            pl.BlockSpec((4, D_FUSE), lambda i: (0, 0)),             # biases
        ],
        out_specs=pl.BlockSpec((TB, OUT_PAD), lambda i: (i, 0)),
        compiler_params=pltpu.CompilerParams(
            dimension_semantics=("parallel",)),                      # v7x: 2 TCs/chip
    )(x_bf, w1_bf, b1_eff, w_f2_bf, w_p12_bf, w_p3_bf, bias_pack)

    pred_label = out[:B, :C_LABEL]
    pred_domain = out[:B, C_LABEL:C_LABEL + C_DOMAIN]
    return pred_label, pred_domain


def init_params(key):
    """Deterministic synthetic parameters. Linear weights are (in, out)."""
    def linear(k, din, dout):
        kw, kb = jax.random.split(k)
        bound = 1.0 / jnp.sqrt(din)
        w = jax.random.uniform(kw, (din, dout), jnp.float32, -bound, bound)
        b = jax.random.uniform(kb, (1, dout), jnp.float32, -bound, bound)
        return w, b

    keys = jax.random.split(key, 8)
    bn_gamma = jnp.ones((1, D_IN), jnp.float32)
    bn_beta = jnp.zeros((1, D_IN), jnp.float32)
    w_f1, b_f1 = linear(keys[0], D_IN, D_HID)
    w_f2, b_f2 = linear(keys[1], D_HID, D_HID)
    w_l1, b_l1 = linear(keys[2], D_HID, D_HID)
    w_l2, b_l2 = linear(keys[3], D_HID, D_HID)
    w_l3, b_l3 = linear(keys[4], D_HID, C_LABEL)
    w_d1, b_d1 = linear(keys[5], D_HID, D_HID)
    w_d2, b_d2 = linear(keys[6], D_HID, D_HID)
    w_d3, b_d3 = linear(keys[7], D_HID, C_DOMAIN)
    return (
        bn_gamma, bn_beta,
        w_f1, b_f1, w_f2, b_f2,
        w_l1, b_l1, w_l2, b_l2, w_l3, b_l3,
        w_d1, b_d1, w_d2, b_d2, w_d3, b_d3,
    )


def dann_reference_f32(x, params):
    """Pure-f32 JAX reference (matches the PyTorch forward)."""
    (bn_gamma, bn_beta,
     w_f1, b_f1, w_f2, b_f2,
     w_l1, b_l1, w_l2, b_l2, w_l3, b_l3,
     w_d1, b_d1, w_d2, b_d2, w_d3, b_d3) = params
    mean = jnp.mean(x, axis=0, keepdims=True)
    var = jnp.mean((x - mean) ** 2, axis=0, keepdims=True)
    h = (x - mean) / jnp.sqrt(var + BN_EPS) * bn_gamma + bn_beta
    h = jax.nn.relu(h @ w_f1 + b_f1)
    feats = jax.nn.relu(h @ w_f2 + b_f2)
    l = jax.nn.relu(feats @ w_l1 + b_l1)
    l = jax.nn.relu(l @ w_l2 + b_l2)
    pred_label = l @ w_l3 + b_l3
    d = jax.nn.relu(feats @ w_d1 + b_d1)
    d = jax.nn.relu(d @ w_d2 + b_d2)
    pred_domain = d @ w_d3 + b_d3
    return pred_label, pred_domain


def dann_reference_bf16(x, params):
    """Reference with the kernel's numerics: BN folded into layer 1, bf16 matmuls,
    f32 accumulation."""
    (bn_gamma, bn_beta,
     w_f1, b_f1, w_f2, b_f2,
     w_l1, b_l1, w_l2, b_l2, w_l3, b_l3,
     w_d1, b_d1, w_d2, b_d2, w_d3, b_d3) = params

    def mm(a, w):
        return jnp.dot(a.astype(jnp.bfloat16), w.astype(jnp.bfloat16),
                       preferred_element_type=jnp.float32)

    mean = jnp.mean(x, axis=0, keepdims=True)
    var = jnp.mean((x - mean) ** 2, axis=0, keepdims=True)
    scale = bn_gamma * jax.lax.rsqrt(var + BN_EPS)
    shift = bn_beta - mean * scale
    w1_eff = scale.reshape(-1, 1) * w_f1
    b1_eff = shift @ w_f1 + b_f1
    h = jax.nn.relu(mm(x, w1_eff) + b1_eff)
    feats = jax.nn.relu(mm(h, w_f2) + b_f2)
    l = jax.nn.relu(mm(feats, w_l1) + b_l1)
    l = jax.nn.relu(mm(l, w_l2) + b_l2)
    pred_label = mm(l, w_l3) + b_l3
    d = jax.nn.relu(mm(feats, w_d1) + b_d1)
    d = jax.nn.relu(mm(d, w_d2) + b_d2)
    pred_domain = mm(d, w_d3) + b_d3
    return pred_label, pred_domain


if __name__ == "__main__":
    key = jax.random.PRNGKey(0)
    k_x, k_x2, k_p = jax.random.split(key, 3)

    params = init_params(k_p)
    packed = pack_static_params(params)       # packed once, reused every call

    # --- small batch: single grid step ---
    B = 8
    x = jax.random.normal(k_x, (B, D_IN), jnp.float32)
    pred_label, pred_domain = dann_forward(x, packed)
    jax.block_until_ready((pred_label, pred_domain))
    assert pred_label.shape == (B, C_LABEL)
    assert pred_domain.shape == (B, C_DOMAIN)

    ref_label_b, ref_domain_b = dann_reference_bf16(x, params)
    assert jnp.allclose(pred_label, ref_label_b, atol=5e-3, rtol=5e-3)
    assert jnp.allclose(pred_domain, ref_domain_b, atol=5e-3, rtol=5e-3)

    ref_label_f, ref_domain_f = dann_reference_f32(x, params)
    assert jnp.allclose(pred_label, ref_label_f, atol=1e-1, rtol=1e-1)
    assert jnp.allclose(pred_domain, ref_domain_f, atol=1e-1, rtol=1e-1)

    # --- larger batch: exercises the batch grid (2 tiles of 256) + padding path ---
    B2 = 300
    x2 = jax.random.normal(k_x2, (B2, D_IN), jnp.float32)
    pl2, pd2 = dann_forward(x2, packed)
    jax.block_until_ready((pl2, pd2))
    assert pl2.shape == (B2, C_LABEL) and pd2.shape == (B2, C_DOMAIN)

    rl2, rd2 = dann_reference_bf16(x2, params)
    assert jnp.allclose(pl2, rl2, atol=5e-3, rtol=5e-3)
    assert jnp.allclose(pd2, rd2, atol=5e-3, rtol=5e-3)

    print("KERNEL_OK")
</pallas_src>

<mosaic_0001>
module attributes {stable_mosaic.version = 11 : i64} {
  func.func @dann_kernel(%arg0: i32, %arg1: memref<8x384xbf16, #tpu.memory_space<vmem>>, %arg2: memref<384x128xbf16, #tpu.memory_space<vmem>>, %arg3: memref<1x128xf32, #tpu.memory_space<vmem>>, %arg4: memref<128x128xbf16, #tpu.memory_space<vmem>>, %arg5: memref<384x256xbf16, #tpu.memory_space<vmem>>, %arg6: memref<256x128xbf16, #tpu.memory_space<vmem>>, %arg7: memref<4x256xf32, #tpu.memory_space<vmem>>, %arg8: memref<8x128xf32, #tpu.memory_space<vmem>>) attributes {dimension_semantics = [#tpu.dimension_semantics<parallel>], iteration_bounds = array<i64: 1>, scalar_prefetch = 0 : i64, scratch_operands = 0 : i64, tpu.core_type = #tpu.core_type<tc>, window_params = [{transform_indices = @transform_0, window_bounds = array<i64: 8, 384>}, {pipeline_mode = #tpu.pipeline_mode<synchronous>, transform_indices = @transform_1, window_bounds = array<i64: 384, 128>}, {pipeline_mode = #tpu.pipeline_mode<synchronous>, transform_indices = @transform_2, window_bounds = array<i64: 1, 128>}, {pipeline_mode = #tpu.pipeline_mode<synchronous>, transform_indices = @transform_3, window_bounds = array<i64: 128, 128>}, {pipeline_mode = #tpu.pipeline_mode<synchronous>, transform_indices = @transform_4, window_bounds = array<i64: 384, 256>}, {pipeline_mode = #tpu.pipeline_mode<synchronous>, transform_indices = @transform_5, window_bounds = array<i64: 256, 128>}, {pipeline_mode = #tpu.pipeline_mode<synchronous>, transform_indices = @transform_6, window_bounds = array<i64: 4, 256>}, {transform_indices = @transform_7, window_bounds = array<i64: 8, 128>}]} {
    %c0 = arith.constant 0 : index
    %c0_0 = arith.constant 0 : index
    %0 = vector.load %arg1[%c0, %c0_0] : memref<8x384xbf16, #tpu.memory_space<vmem>>, vector<8x384xbf16>
    %c0_1 = arith.constant 0 : index
    %c0_2 = arith.constant 0 : index
    %1 = vector.load %arg2[%c0_1, %c0_2] : memref<384x128xbf16, #tpu.memory_space<vmem>>, vector<384x128xbf16>
    %cst = arith.constant dense<0.000000e+00> : vector<8x128xf32>
    %2 = tpu.matmul %0, %1, %cst {dimension_numbers = #tpu.dot_dimension_numbers<[1], [0], [0], [1], [0, 0, 1, 1], [], []>} : vector<8x384xbf16>, vector<384x128xbf16>, vector<8x128xf32> -> vector<8x128xf32>
    %c0_3 = arith.constant 0 : index
    %c0_4 = arith.constant 0 : index
    %3 = vector.load %arg3[%c0_3, %c0_4] : memref<1x128xf32, #tpu.memory_space<vmem>>, vector<1x128xf32>
    %4 = vector.broadcast %3 : vector<1x128xf32> to vector<8x128xf32>
    %5 = arith.addf %2, %4 : vector<8x128xf32>
    %cst_5 = arith.constant 0.000000e+00 : f32
    %6 = vector.broadcast %cst_5 : f32 to vector<8x128xf32>
    %7 = arith.maximumf %5, %6 : vector<8x128xf32>
    %8 = arith.truncf %7 : vector<8x128xf32> to vector<8x128xbf16>
    %c0_6 = arith.constant 0 : index
    %c0_7 = arith.constant 0 : index
    %9 = vector.load %arg4[%c0_6, %c0_7] : memref<128x128xbf16, #tpu.memory_space<vmem>>, vector<128x128xbf16>
    %cst_8 = arith.constant dense<0.000000e+00> : vector<8x128xf32>
    %10 = tpu.matmul %8, %9, %cst_8 {dimension_numbers = #tpu.dot_dimension_numbers<[1], [0], [0], [1], [0, 0, 1, 1], [], []>} : vector<8x128xbf16>, vector<128x128xbf16>, vector<8x128xf32> -> vector<8x128xf32>
    %c0_9 = arith.constant 0 : index
    %c0_10 = arith.constant 0 : index
    %11 = vector.load %arg7[%c0_9, %c0_10] : memref<4x256xf32, #tpu.memory_space<vmem>>, vector<1x128xf32>
    %12 = vector.broadcast %11 : vector<1x128xf32> to vector<8x128xf32>
    %13 = arith.addf %10, %12 : vector<8x128xf32>
    %cst_11 = arith.constant 0.000000e+00 : f32
    %14 = vector.broadcast %cst_11 : f32 to vector<8x128xf32>
    %15 = arith.maximumf %13, %14 : vector<8x128xf32>
    %c0_12 = arith.constant 0 : index
    %c0_13 = arith.constant 0 : index
    %16 = vector.load %arg5[%c0_12, %c0_13] : memref<384x256xbf16, #tpu.memory_space<vmem>>, vector<128x256xbf16>
    %c128 = arith.constant 128 : index
    %c0_14 = arith.constant 0 : index
    %17 = vector.load %arg5[%c128, %c0_14] : memref<384x256xbf16, #tpu.memory_space<vmem>>, vector<256x256xbf16>
    %18 = arith.truncf %15 : vector<8x128xf32> to vector<8x128xbf16>
    %cst_15 = arith.constant dense<0.000000e+00> : vector<8x256xf32>
    %19 = tpu.matmul %18, %16, %cst_15 {dimension_numbers = #tpu.dot_dimension_numbers<[1], [0], [0], [1], [0, 0, 1, 1], [], []>} : vector<8x128xbf16>, vector<128x256xbf16>, vector<8x256xf32> -> vector<8x256xf32>
    %c1 = arith.constant 1 : index
    %c0_16 = arith.constant 0 : index
    %20 = vector.load %arg7[%c1, %c0_16] : memref<4x256xf32, #tpu.memory_space<vmem>>, vector<1x256xf32>
    %21 = vector.broadcast %20 : vector<1x256xf32> to vector<8x256xf32>
    %22 = arith.addf %19, %21 : vector<8x256xf32>
    %cst_17 = arith.constant 0.000000e+00 : f32
    %23 = vector.broadcast %cst_17 : f32 to vector<8x256xf32>
    %24 = arith.maximumf %22, %23 : vector<8x256xf32>
    %25 = arith.truncf %24 : vector<8x256xf32> to vector<8x256xbf16>
    %cst_18 = arith.constant dense<0.000000e+00> : vector<8x256xf32>
    %26 = tpu.matmul %25, %17, %cst_18 {dimension_numbers = #tpu.dot_dimension_numbers<[1], [0], [0], [1], [0, 0, 1, 1], [], []>} : vector<8x256xbf16>, vector<256x256xbf16>, vector<8x256xf32> -> vector<8x256xf32>
    %c2 = arith.constant 2 : index
    %c0_19 = arith.constant 0 : index
    %27 = vector.load %arg7[%c2, %c0_19] : memref<4x256xf32, #tpu.memory_space<vmem>>, vector<1x256xf32>
    %28 = vector.broadcast %27 : vector<1x256xf32> to vector<8x256xf32>
    %29 = arith.addf %26, %28 : vector<8x256xf32>
    %cst_20 = arith.constant 0.000000e+00 : f32
    %30 = vector.broadcast %cst_20 : f32 to vector<8x256xf32>
    %31 = arith.maximumf %29, %30 : vector<8x256xf32>
    %32 = arith.truncf %31 : vector<8x256xf32> to vector<8x256xbf16>
    %c0_21 = arith.constant 0 : index
    %c0_22 = arith.constant 0 : index
    %33 = vector.load %arg6[%c0_21, %c0_22] : memref<256x128xbf16, #tpu.memory_space<vmem>>, vector<256x128xbf16>
    %cst_23 = arith.constant dense<0.000000e+00> : vector<8x128xf32>
    %34 = tpu.matmul %32, %33, %cst_23 {dimension_numbers = #tpu.dot_dimension_numbers<[1], [0], [0], [1], [0, 0, 1, 1], [], []>} : vector<8x256xbf16>, vector<256x128xbf16>, vector<8x128xf32> -> vector<8x128xf32>
    %c3 = arith.constant 3 : index
    %c0_24 = arith.constant 0 : index
    %35 = vector.load %arg7[%c3, %c0_24] : memref<4x256xf32, #tpu.memory_space<vmem>>, vector<1x128xf32>
    %36 = vector.broadcast %35 : vector<1x128xf32> to vector<8x128xf32>
    %37 = arith.addf %34, %36 : vector<8x128xf32>
    %c0_25 = arith.constant 0 : index
    %c0_26 = arith.constant 0 : index
    %38 = vector.load %arg8[%c0_25, %c0_26] : memref<8x128xf32, #tpu.memory_space<vmem>>, vector<8x128xf32>
    tpu.vector_store %arg8[%c0_25, %c0_26], %37 {strides = array<i32>} : memref<8x128xf32, #tpu.memory_space<vmem>>, vector<8x128xf32>,
    return
  }
  func.func @transform_0(%arg0: i32) -> (i32, i32) {
    %c0_i32 = arith.constant 0 : i32
    %c0_i32_0 = arith.constant 0 : i32
    return %arg0, %c0_i32 : i32, i32
  }
  func.func @transform_1(%arg0: i32) -> (i32, i32) {
    %c0_i32 = arith.constant 0 : i32
    %c0_i32_0 = arith.constant 0 : i32
    %c0_i32_1 = arith.constant 0 : i32
    return %c0_i32, %c0_i32_0 : i32, i32
  }
  func.func @transform_2(%arg0: i32) -> (i32, i32) {
    %c0_i32 = arith.constant 0 : i32
    %c0_i32_0 = arith.constant 0 : i32
    %c0_i32_1 = arith.constant 0 : i32
    return %c0_i32, %c0_i32_0 : i32, i32
  }
  func.func @transform_3(%arg0: i32) -> (i32, i32) {
    %c0_i32 = arith.constant 0 : i32
    %c0_i32_0 = arith.constant 0 : i32
    %c0_i32_1 = arith.constant 0 : i32
    return %c0_i32, %c0_i32_0 : i32, i32
  }
  func.func @transform_4(%arg0: i32) -> (i32, i32) {
    %c0_i32 = arith.constant 0 : i32
    %c0_i32_0 = arith.constant 0 : i32
    %c0_i32_1 = arith.constant 0 : i32
    return %c0_i32, %c0_i32_0 : i32, i32
  }
  func.func @transform_5(%arg0: i32) -> (i32, i32) {
    %c0_i32 = arith.constant 0 : i32
    %c0_i32_0 = arith.constant 0 : i32
    %c0_i32_1 = arith.constant 0 : i32
    return %c0_i32, %c0_i32_0 : i32, i32
  }
  func.func @transform_6(%arg0: i32) -> (i32, i32) {
    %c0_i32 = arith.constant 0 : i32
    %c0_i32_0 = arith.constant 0 : i32
    %c0_i32_1 = arith.constant 0 : i32
    return %c0_i32, %c0_i32_0 : i32, i32
  }
  func.func @transform_7(%arg0: i32) -> (i32, i32) {
    %c0_i32 = arith.constant 0 : i32
    %c0_i32_0 = arith.constant 0 : i32
    return %arg0, %c0_i32 : i32, i32
  }
}

</mosaic_0001>

<llo_original>
// kernel: dann_forward.1
$region0: #{dann_forward.1}
  #allocation0 [shape = 'u32[]', space=smem, size = 0x4, offset = 0x4, fixed_abs, tag = 'smem constant byte address 0x4 - core index']
  #allocation1 [shape = 'u32[144,128]{1,0:T(1,128)}', space=vmem, size = 0x12000, scoped, tag = 'internal scratch']
  %s0 = inlined_call_operand.vmem [shape: bf16[8,384], index: 0, kind: input, shape index: {}]
  %s1 = inlined_call_operand.vmem [shape: bf16[384,128], index: 1, kind: input, shape index: {}]
  %s2 = inlined_call_operand.vmem [shape: f32[1,128], index: 2, kind: input, shape index: {}]
  %s3 = inlined_call_operand.vmem [shape: bf16[128,128], index: 3, kind: input, shape index: {}]
  %s4 = inlined_call_operand.vmem [shape: bf16[384,256], index: 4, kind: input, shape index: {}]
  %s5 = inlined_call_operand.vmem [shape: bf16[256,128], index: 5, kind: input, shape index: {}]
  %s6 = inlined_call_operand.vmem [shape: f32[4,256], index: 6, kind: input, shape index: {}]
  %s7 = inlined_call_operand.vmem [shape: f32[8,128], index: 7, kind: output, shape index: {}]
  %s8 = sld [smem:[#allocation0]]
  $region38: #{dann_forward.1} parent=0
    _
  %s10 = ssub.s32 1, %s8
  %s11 = scalar_select 0, %s10, %s8
  // Predicated region
  $region2: #{dann_forward.1} parent=0 // pred_check
    _
  $region3: #{dann_forward.1} parent=0 // pred_check_branch
    %13 = sbr.rel (0) target = $region5
  $region4: #{dann_forward.1} parent=0 // pred_region
    _
  $region5: #{dann_forward.1} parent=0 // pred_fallthru
    _
  // Predicated region
  $region6: #{dann_forward.1} parent=0 // pred_check
    _
  $region7: #{dann_forward.1} parent=0 // pred_check_branch
    %15 = sbr.rel (0) target = $region9
  $region8: #{dann_forward.1} parent=0 // pred_region
    _
  $region9: #{dann_forward.1} parent=0 // pred_fallthru
    _
  // Predicated region
  $region10: #{dann_forward.1} parent=0 // pred_check
    _
  $region11: #{dann_forward.1} parent=0 // pred_check_branch
    %17 = sbr.rel (0) target = $region13
  $region12: #{dann_forward.1} parent=0 // pred_region
    _
  $region13: #{dann_forward.1} parent=0 // pred_fallthru
    _
  // Predicated region
  $region14: #{dann_forward.1} parent=0 // pred_check
    _
  $region15: #{dann_forward.1} parent=0 // pred_check_branch
    %19 = sbr.rel (0) target = $region17
  $region16: #{dann_forward.1} parent=0 // pred_region
    _
  $region17: #{dann_forward.1} parent=0 // pred_fallthru
    _
  // Predicated region
  $region18: #{dann_forward.1} parent=0 // pred_check
    _
  $region19: #{dann_forward.1} parent=0 // pred_check_branch
    %21 = sbr.rel (0) target = $region21
  $region20: #{dann_forward.1} parent=0 // pred_region
    _
  $region21: #{dann_forward.1} parent=0 // pred_fallthru
    _
  // Predicated region
  $region22: #{dann_forward.1} parent=0 // pred_check
    _
  $region23: #{dann_forward.1} parent=0 // pred_check_branch
    %23 = sbr.rel (0) target = $region25
  $region24: #{dann_forward.1} parent=0 // pred_region
    _
  $region25: #{dann_forward.1} parent=0 // pred_fallthru
    _
  // Predicated region
  $region26: #{dann_forward.1} parent=0 // pred_check
    _
  $region27: #{dann_forward.1} parent=0 // pred_check_branch
    %25 = sbr.rel (0) target = $region29
  $region28: #{dann_forward.1} parent=0 // pred_region
    _
  $region29: #{dann_forward.1} parent=0 // pred_fallthru
    _
  %v27 = vld [vmem:[%s0] sm:$0xff]
  %v28 = vld [vmem:[%s0 + $0x8] sm:$0xf]
  %v29 = vld [vmem:[%s1] sm:$0xf]
  %v30 = vld [vmem:[%s1 + $0x4] sm:$0xf]
  %v31 = vld [vmem:[%s1 + $0x8] sm:$0xf]
  %v32 = vld [vmem:[%s1 + $0xc] sm:$0xf]
  %v33 = vld [vmem:[%s1 + $0x10] sm:$0xf]
  %v34 = vld [vmem:[%s1 + $0x14] sm:$0xf]
  %v35 = vld [vmem:[%s1 + $0x18] sm:$0xf]
  %v36 = vld [vmem:[%s1 + $0x1c] sm:$0xf]
  %v37 = vld [vmem:[%s1 + $0x20] sm:$0xf]
  %v38 = vld [vmem:[%s1 + $0x24] sm:$0xf]
  %v39 = vld [vmem:[%s1 + $0x28] sm:$0xf]
  %v40 = vld [vmem:[%s1 + $0x2c] sm:$0xf]
  %v41 = vld [vmem:[%s1 + $0x30] sm:$0xf]
  %v42 = vld [vmem:[%s1 + $0x34] sm:$0xf]
  %v43 = vld [vmem:[%s1 + $0x38] sm:$0xf]
  %v44 = vld [vmem:[%s1 + $0x3c] sm:$0xf]
  %v45 = vld [vmem:[%s1 + $0x40] sm:$0xf]
  %v46 = vld [vmem:[%s1 + $0x44] sm:$0xf]
  %v47 = vld [vmem:[%s1 + $0x48] sm:$0xf]
  %v48 = vld [vmem:[%s1 + $0x4c] sm:$0xf]
  %v49 = vld [vmem:[%s1 + $0x50] sm:$0xf]
  %v50 = vld [vmem:[%s1 + $0x54] sm:$0xf]
  %v51 = vld [vmem:[%s1 + $0x58] sm:$0xf]
  %v52 = vld [vmem:[%s1 + $0x5c] sm:$0xf]
  %v53 = vld [vmem:[%s1 + $0x60] sm:$0xf]
  %v54 = vld [vmem:[%s1 + $0x64] sm:$0xf]
  %v55 = vld [vmem:[%s1 + $0x68] sm:$0xf]
  %v56 = vld [vmem:[%s1 + $0x6c] sm:$0xf]
  %v57 = vld [vmem:[%s1 + $0x70] sm:$0xf]
  %v58 = vld [vmem:[%s1 + $0x74] sm:$0xf]
  %v59 = vld [vmem:[%s1 + $0x78] sm:$0xf]
  %v60 = vld [vmem:[%s1 + $0x7c] sm:$0xf]
  %v61 = vld [vmem:[%s1 + $0x80] sm:$0xf]
  %v62 = vld [vmem:[%s1 + $0x84] sm:$0xf]
  %v63 = vld [vmem:[%s1 + $0x88] sm:$0xf]
  %v64 = vld [vmem:[%s1 + $0x8c] sm:$0xf]
  %v65 = vld [vmem:[%s1 + $0x90] sm:$0xf]
  %v66 = vld [vmem:[%s1 + $0x94] sm:$0xf]
  %v67 = vld [vmem:[%s1 + $0x98] sm:$0xf]
  %v68 = vld [vmem:[%s1 + $0x9c] sm:$0xf]
  %v69 = vld [vmem:[%s1 + $0xa0] sm:$0xf]
  %v70 = vld [vmem:[%s1 + $0xa4] sm:$0xf]
  %v71 = vld [vmem:[%s1 + $0xa8] sm:$0xf]
  %v72 = vld [vmem:[%s1 + $0xac] sm:$0xf]
  %v73 = vld [vmem:[%s1 + $0xb0] sm:$0xf]
  %v74 = vld [vmem:[%s1 + $0xb4] sm:$0xf]
  %v75 = vld [vmem:[%s1 + $0xb8] sm:$0xf]
  %v76 = vld [vmem:[%s1 + $0xbc] sm:$0xf]
  %v77 = vld [vmem:[%s2] sm:$0x1]
  %v79 = vlaneseq
  %v80 = vshrl.u32 %v79, 7
  %v81 = vsub.s32 0, %v80
  %v82 = vrot.slane %v77, %v81
  %v86 = vunpack.c.l.b16 %v27
  %v87 = vunpack.c.h.b16 %v27
  %v88 = vunpack.c.l.b16 %v28
  %v89 = vpack.c.b16 %v86, %v86
  %v90 = vpack.c.b16 %v87, %v87
  %v91 = vpack.c.b16 %v88, %v88
  %v143 = vunpack.c.l.b16 %v29
  %v144 = vunpack.c.l.b16 %v30
  %v145 = vunpack.c.l.b16 %v31
  %v146 = vunpack.c.l.b16 %v32
  %v147 = vunpack.c.l.b16 %v33
  %v148 = vunpack.c.l.b16 %v34
  %v149 = vunpack.c.l.b16 %v35
  %v150 = vunpack.c.l.b16 %v36
  %v151 = vunpack.c.l.b16 %v37
  %v152 = vunpack.c.l.b16 %v38
  %v153 = vunpack.c.l.b16 %v39
  %v154 = vunpack.c.l.b16 %v40
  %v155 = vunpack.c.l.b16 %v41
  %v156 = vunpack.c.l.b16 %v42
  %v157 = vunpack.c.l.b16 %v43
  %v158 = vunpack.c.l.b16 %v44
  %v159 = vunpack.c.l.b16 %v45
  %v160 = vunpack.c.l.b16 %v46
  %v161 = vunpack.c.l.b16 %v47
  %v162 = vunpack.c.l.b16 %v48
  %v163 = vunpack.c.l.b16 %v49
  %v164 = vunpack.c.l.b16 %v50
  %v165 = vunpack.c.l.b16 %v51
  %v166 = vunpack.c.l.b16 %v52
  %v167 = vunpack.c.l.b16 %v53
  %v168 = vunpack.c.l.b16 %v54
  %v169 = vunpack.c.l.b16 %v55
  %v170 = vunpack.c.l.b16 %v56
  %v171 = vunpack.c.l.b16 %v57
  %v172 = vunpack.c.l.b16 %v58
  %v173 = vunpack.c.l.b16 %v59
  %v174 = vunpack.c.l.b16 %v60
  %v175 = vunpack.c.l.b16 %v61
  %v176 = vunpack.c.l.b16 %v62
  %v177 = vunpack.c.l.b16 %v63
  %v178 = vunpack.c.l.b16 %v64
  %v179 = vunpack.c.l.b16 %v65
  %v180 = vunpack.c.l.b16 %v66
  %v181 = vunpack.c.l.b16 %v67
  %v182 = vunpack.c.l.b16 %v68
  %v183 = vunpack.c.l.b16 %v69
  %v184 = vunpack.c.l.b16 %v70
  %v185 = vunpack.c.l.b16 %v71
  %v186 = vunpack.c.l.b16 %v72
  %v187 = vunpack.c.l.b16 %v73
  %v188 = vunpack.c.l.b16 %v74
  %v189 = vunpack.c.l.b16 %v75
  %v190 = vunpack.c.l.b16 %v76
  %v191 = vpack.c.b16 %v144, %v143
  %v192 = vpack.c.b16 %v146, %v145
  %v193 = vpack.c.b16 %v148, %v147
  %v194 = vpack.c.b16 %v150, %v149
  %v195 = vpack.c.b16 %v152, %v151
  %v196 = vpack.c.b16 %v154, %v153
  %v197 = vpack.c.b16 %v156, %v155
  %v198 = vpack.c.b16 %v158, %v157
  %v199 = vpack.c.b16 %v160, %v159
  %v200 = vpack.c.b16 %v162, %v161
  %v201 = vpack.c.b16 %v164, %v163
  %v202 = vpack.c.b16 %v166, %v165
  %v203 = vpack.c.b16 %v168, %v167
  %v204 = vpack.c.b16 %v170, %v169
  %v205 = vpack.c.b16 %v172, %v171
  %v206 = vpack.c.b16 %v174, %v173
  %v207 = vpack.c.b16 %v176, %v175
  %v208 = vpack.c.b16 %v178, %v177
  %v209 = vpack.c.b16 %v180, %v179
  %v210 = vpack.c.b16 %v182, %v181
  %v211 = vpack.c.b16 %v184, %v183
  %v212 = vpack.c.b16 %v186, %v185
  %v213 = vpack.c.b16 %v188, %v187
  %v214 = vpack.c.b16 %v190, %v189
  %239 = vmatprep.subr.bf16.mxu0 0
  %240 = vmatpush1.bf16.msra.mxu0 %v191
  %241 = vmatprep.subr.bf16.mxu0 0
  %242 = vmatpush1.bf16.msra.mxu0 %v192
  %243 = vmatprep.subr.bf16.mxu0 0
  %244 = vmatpush1.bf16.msra.mxu0 %v193
  %245 = vmatprep.subr.bf16.mxu0 0
  %246 = vmatpush1.bf16.msra.mxu0 %v194
  %247 = vmatprep.subr.bf16.mxu0 0
  %248 = vmatpush1.bf16.msra.mxu0 %v195
  %249 = vmatprep.subr.bf16.mxu0 0
  %250 = vmatpush1.bf16.msra.mxu0 %v196
  %251 = vmatprep.subr.bf16.mxu0 0
  %252 = vmatpush1.bf16.msra.mxu0 %v197
  %253 = vmatprep.subr.bf16.mxu0 0
  %254 = vmatpush1.bf16.msra.mxu0 %v198
  %255 = vmatprep.subr.bf16.mxu0 0
  %256 = vmatpush1.bf16.msra.mxu0 %v199
  %257 = vmatprep.subr.bf16.mxu0 0
  %258 = vmatpush1.bf16.msra.mxu0 %v200
  %259 = vmatprep.subr.bf16.mxu0 0
  %260 = vmatpush1.bf16.msra.mxu0 %v201
  %261 = vmatprep.subr.bf16.mxu0 0
  %262 = vmatpush1.bf16.msra.mxu0 %v202
  %263 = vmatprep.subr.bf16.mxu0 0
  %264 = vmatpush1.bf16.msra.mxu0 %v203
  %265 = vmatprep.subr.bf16.mxu0 0
  %266 = vmatpush1.bf16.msra.mxu0 %v204
  %267 = vmatprep.subr.bf16.mxu0 0
  %268 = vmatpush1.bf16.msra.mxu0 %v205
  %269 = vmatprep.subr.bf16.mxu0 0
  %270 = vmatpush1.bf16.msra.mxu0 %v206
  %271 = vmatprep.mubr.bf16.mxu0 %v90
  %272 = vmatmul.mubr.bf16.gmra.mrb[0].mxu0 %v89
  %v273 = vpop.f32.mrb[0].mxu0
  %v274 = vadd.f32 %v82, %v273
  %v275 = vpop.f32.mrb[0].mxu0
  %v276 = vpop.f32.mrb[0].mxu0
  %v277 = vpop.f32.mrb[0].mxu0
  %278 = vdwg.mxu0
  %279 = vmatprep.subr.bf16.mxu0 0
  %280 = vmatpush1.bf16.msra.mxu0 %v207
  %281 = vmatprep.subr.bf16.mxu0 0
  %282 = vmatpush1.bf16.msra.mxu0 %v208
  %283 = vmatprep.subr.bf16.mxu0 0
  %284 = vmatpush1.bf16.msra.mxu0 %v209
  %285 = vmatprep.subr.bf16.mxu0 0
  %286 = vmatpush1.bf16.msra.mxu0 %v210
  %287 = vmatprep.subr.bf16.mxu0 0
  %288 = vmatpush1.bf16.msra.mxu0 %v211
  %289 = vmatprep.subr.bf16.mxu0 0
  %290 = vmatpush1.bf16.msra.mxu0 %v212
  %291 = vmatprep.subr.bf16.mxu0 0
  %292 = vmatpush1.bf16.msra.mxu0 %v213
  %293 = vmatprep.subr.bf16.mxu0 0
  %294 = vmatpush1.bf16.msra.mxu0 %v214
  %295 = vmatprep.subr.bf16.mxu0 0
  %296 = vmatpush1.bf16.msra.mxu0 0
  %297 = vmatprep.subr.bf16.mxu0 0
  %298 = vmatpush1.bf16.msra.mxu0 0
  %299 = vmatprep.subr.bf16.mxu0 0
  %300 = vmatpush1.bf16.msra.mxu0 0
  %301 = vmatprep.subr.bf16.mxu0 0
  %302 = vmatpush1.bf16.msra.mxu0 0
  %303 = vmatprep.subr.bf16.mxu0 0
  %304 = vmatpush1.bf16.msra.mxu0 0
  %305 = vmatprep.subr.bf16.mxu0 0
  %306 = vmatpush1.bf16.msra.mxu0 0
  %307 = vmatprep.subr.bf16.mxu0 0
  %308 = vmatpush1.bf16.msra.mxu0 0
  %309 = vmatprep.subr.bf16.mxu0 0
  %310 = vmatpush1.bf16.msra.mxu0 0
  %311 = vmatprep.mubr.bf16.mxu0 0
  %312 = vmatmul.mubr.bf16.gmra.mrb[0].mxu0 %v91
  %v313 = vpop.f32.mrb[0].mxu0
  %v314 = vadd.f32 %v274, %v313
  %v315 = vpop.f32.mrb[0].mxu0
  %v316 = vpop.f32.mrb[0].mxu0
  %v317 = vpop.f32.mrb[0].mxu0
  %318 = vdwg.mxu0
  %v319 = vmax.f32 %v314, 0.0
  %v320 = vpack.c.bf16 %v319, %v319
  %v321 = vld [vmem:[%s3] sm:$0xf]
  %v322 = vld [vmem:[%s3 + $0x4] sm:$0xf]
  %v323 = vld [vmem:[%s3 + $0x8] sm:$0xf]
  %v324 = vld [vmem:[%s3 + $0xc] sm:$0xf]
  %v325 = vld [vmem:[%s3 + $0x10] sm:$0xf]
  %v326 = vld [vmem:[%s3 + $0x14] sm:$0xf]
  %v327 = vld [vmem:[%s3 + $0x18] sm:$0xf]
  %v328 = vld [vmem:[%s3 + $0x1c] sm:$0xf]
  %v329 = vld [vmem:[%s3 + $0x20] sm:$0xf]
  %v330 = vld [vmem:[%s3 + $0x24] sm:$0xf]
  %v331 = vld [vmem:[%s3 + $0x28] sm:$0xf]
  %v332 = vld [vmem:[%s3 + $0x2c] sm:$0xf]
  %v333 = vld [vmem:[%s3 + $0x30] sm:$0xf]
  %v334 = vld [vmem:[%s3 + $0x34] sm:$0xf]
  %v335 = vld [vmem:[%s3 + $0x38] sm:$0xf]
  %v336 = vld [vmem:[%s3 + $0x3c] sm:$0xf]
  %v337 = vld [vmem:[%s6] sm:$0x1]
  %v338 = vlaneseq
  %v339 = vshrl.u32 %v338, 7
  %v340 = vsub.s32 0, %v339
  %v341 = vrot.slane %v337, %v340
  %v358 = vunpack.c.l.b16 %v321
  %v359 = vunpack.c.l.b16 %v322
  %v360 = vunpack.c.l.b16 %v323
  %v361 = vunpack.c.l.b16 %v324
  %v362 = vunpack.c.l.b16 %v325
  %v363 = vunpack.c.l.b16 %v326
  %v364 = vunpack.c.l.b16 %v327
  %v365 = vunpack.c.l.b16 %v328
  %v366 = vunpack.c.l.b16 %v329
  %v367 = vunpack.c.l.b16 %v330
  %v368 = vunpack.c.l.b16 %v331
  %v369 = vunpack.c.l.b16 %v332
  %v370 = vunpack.c.l.b16 %v333
  %v371 = vunpack.c.l.b16 %v334
  %v372 = vunpack.c.l.b16 %v335
  %v373 = vunpack.c.l.b16 %v336
  %v374 = vpack.c.b16 %v359, %v358
  %v375 = vpack.c.b16 %v361, %v360
  %v376 = vpack.c.b16 %v363, %v362
  %v377 = vpack.c.b16 %v365, %v364
  %v378 = vpack.c.b16 %v367, %v366
  %v379 = vpack.c.b16 %v369, %v368
  %v380 = vpack.c.b16 %v371, %v370
  %v381 = vpack.c.b16 %v373, %v372
  %390 = vmatprep.subr.bf16.mxu0 0
  %391 = vmatpush1.bf16.msra.mxu0 %v374
  %392 = vmatprep.subr.bf16.mxu0 0
  %393 = vmatpush1.bf16.msra.mxu0 %v375
  %394 = vmatprep.subr.bf16.mxu0 0
  %395 = vmatpush1.bf16.msra.mxu0 %v376
  %396 = vmatprep.subr.bf16.mxu0 0
  %397 = vmatpush1.bf16.msra.mxu0 %v377
  %398 = vmatprep.subr.bf16.mxu0 0
  %399 = vmatpush1.bf16.msra.mxu0 %v378
  %400 = vmatprep.subr.bf16.mxu0 0
  %401 = vmatpush1.bf16.msra.mxu0 %v379
  %402 = vmatprep.subr.bf16.mxu0 0
  %403 = vmatpush1.bf16.msra.mxu0 %v380
  %404 = vmatprep.subr.bf16.mxu0 0
  %405 = vmatpush1.bf16.msra.mxu0 %v381
  %406 = vmatprep.subr.bf16.mxu0 0
  %407 = vmatpush1.bf16.msra.mxu0 0
  %408 = vmatprep.subr.bf16.mxu0 0
  %409 = vmatpush1.bf16.msra.mxu0 0
  %410 = vmatprep.subr.bf16.mxu0 0
  %411 = vmatpush1.bf16.msra.mxu0 0
  %412 = vmatprep.subr.bf16.mxu0 0
  %413 = vmatpush1.bf16.msra.mxu0 0
  %414 = vmatprep.subr.bf16.mxu0 0
  %415 = vmatpush1.bf16.msra.mxu0 0
  %416 = vmatprep.subr.bf16.mxu0 0
  %417 = vmatpush1.bf16.msra.mxu0 0
  %418 = vmatprep.subr.bf16.mxu0 0
  %419 = vmatpush1.bf16.msra.mxu0 0
  %420 = vmatprep.subr.bf16.mxu0 0
  %421 = vmatpush1.bf16.msra.mxu0 0
  %422 = vmatprep.mubr.bf16.mxu0 0
  %423 = vmatmul.mubr.bf16.gmra.mrb[0].mxu0 %v320
  %v424 = vpop.f32.mrb[0].mxu0
  %v425 = vadd.f32 %v341, %v424
  %v426 = vpop.f32.mrb[0].mxu0
  %v427 = vpop.f32.mrb[0].mxu0
  %v428 = vpop.f32.mrb[0].mxu0
  %429 = vdwg.mxu0
  %v430 = vmax.f32 %v425, 0.0
  %v431 = vld [vmem:[%s4] sm:$0xff]
  %v432 = vld [vmem:[%s4 + $0x8] sm:$0xff]
  %v433 = vld [vmem:[%s4 + $0x10] sm:$0xff]
  %v434 = vld [vmem:[%s4 + $0x18] sm:$0xff]
  %v435 = vld [vmem:[%s4 + $0x20] sm:$0xff]
  %v436 = vld [vmem:[%s4 + $0x28] sm:$0xff]
  %v437 = vld [vmem:[%s4 + $0x30] sm:$0xff]
  %v438 = vld [vmem:[%s4 + $0x38] sm:$0xff]
  %v439 = vld [vmem:[%s4 + $0x40] sm:$0xff]
  %v440 = vld [vmem:[%s4 + $0x48] sm:$0xff]
  %v441 = vld [vmem:[%s4 + $0x50] sm:$0xff]
  %v442 = vld [vmem:[%s4 + $0x58] sm:$0xff]
  %v443 = vld [vmem:[%s4 + $0x60] sm:$0xff]
  %v444 = vld [vmem:[%s4 + $0x68] sm:$0xff]
  %v445 = vld [vmem:[%s4 + $0x70] sm:$0xff]
  %v446 = vld [vmem:[%s4 + $0x78] sm:$0xff]
  %v447 = vld [vmem:[%s4 + $0x80] sm:$0xff]
  %v448 = vld [vmem:[%s4 + $0x88] sm:$0xff]
  %v449 = vld [vmem:[%s4 + $0x90] sm:$0xff]
  %v450 = vld [vmem:[%s4 + $0x98] sm:$0xff]
  %v451 = vld [vmem:[%s4 + $0xa0] sm:$0xff]
  %v452 = vld [vmem:[%s4 + $0xa8] sm:$0xff]
  %v453 = vld [vmem:[%s4 + $0xb0] sm:$0xff]
  %v454 = vld [vmem:[%s4 + $0xb8] sm:$0xff]
  %v455 = vld [vmem:[%s4 + $0xc0] sm:$0xff]
  %v456 = vld [vmem:[%s4 + $0xc8] sm:$0xff]
  %v457 = vld [vmem:[%s4 + $0xd0] sm:$0xff]
  %v458 = vld [vmem:[%s4 + $0xd8] sm:$0xff]
  %v459 = vld [vmem:[%s4 + $0xe0] sm:$0xff]
  %v460 = vld [vmem:[%s4 + $0xe8] sm:$0xff]
  %v461 = vld [vmem:[%s4 + $0xf0] sm:$0xff]
  %v462 = vld [vmem:[%s4 + $0xf8] sm:$0xff]
  %v463 = vld [vmem:[%s4 + $0x100] sm:$0xff]
  %v464 = vld [vmem:[%s4 + $0x108] sm:$0xff]
  %v465 = vld [vmem:[%s4 + $0x110] sm:$0xff]
  %v466 = vld [vmem:[%s4 + $0x118] sm:$0xff]
  %v467 = vld [vmem:[%s4 + $0x120] sm:$0xff]
  %v468 = vld [vmem:[%s4 + $0x128] sm:$0xff]
  %v469 = vld [vmem:[%s4 + $0x130] sm:$0xff]
  %v470 = vld [vmem:[%s4 + $0x138] sm:$0xff]
  %v471 = vld [vmem:[%s4 + $0x140] sm:$0xff]
  %v472 = vld [vmem:[%s4 + $0x148] sm:$0xff]
  %v473 = vld [vmem:[%s4 + $0x150] sm:$0xff]
  %v474 = vld [vmem:[%s4 + $0x158] sm:$0xff]
  %v475 = vld [vmem:[%s4 + $0x160] sm:$0xff]
  %v476 = vld [vmem:[%s4 + $0x168] sm:$0xff]
  %v477 = vld [vmem:[%s4 + $0x170] sm:$0xff]
  %v478 = vld [vmem:[%s4 + $0x178] sm:$0xff]
  %v479 = vpack.c.bf16 %v430, %v430
  %s480 = scalar_lea.vmem %s6, 1
  %v481 = vld [vmem:[%s480] ss:$4 sm:$0x3]
  %v483 = vlaneseq
  %v484 = vshrl.u32 %v483, 7
  %v485 = vsub.s32 0, %v484
  %v486 = vrot.slane %v481, %v485
  %v487 = vlaneseq
  %v488 = vshrl.u32 %v487, 7
  %v489 = vsub.s32 1, %v488
  %v490 = vrot.slane %v481, %v489
  %v509 = vunpack.c.l.b16 %v431
  %v510 = vunpack.c.h.b16 %v431
  %v511 = vunpack.c.l.b16 %v432
  %v512 = vunpack.c.h.b16 %v432
  %v513 = vunpack.c.l.b16 %v433
  %v514 = vunpack.c.h.b16 %v433
  %v515 = vunpack.c.l.b16 %v434
  %v516 = vunpack.c.h.b16 %v434
  %v517 = vunpack.c.l.b16 %v435
  %v518 = vunpack.c.h.b16 %v435
  %v519 = vunpack.c.l.b16 %v436
  %v520 = vunpack.c.h.b16 %v436
  %v521 = vunpack.c.l.b16 %v437
  %v522 = vunpack.c.h.b16 %v437
  %v523 = vunpack.c.l.b16 %v438
  %v524 = vunpack.c.h.b16 %v438
  %v525 = vunpack.c.l.b16 %v439
  %v526 = vunpack.c.h.b16 %v439
  %v527 = vunpack.c.l.b16 %v440
  %v528 = vunpack.c.h.b16 %v440
  %v529 = vunpack.c.l.b16 %v441
  %v530 = vunpack.c.h.b16 %v441
  %v531 = vunpack.c.l.b16 %v442
  %v532 = vunpack.c.h.b16 %v442
  %v533 = vunpack.c.l.b16 %v443
  %v534 = vunpack.c.h.b16 %v443
  %v535 = vunpack.c.l.b16 %v444
  %v536 = vunpack.c.h.b16 %v444
  %v537 = vunpack.c.l.b16 %v445
  %v538 = vunpack.c.h.b16 %v445
  %v539 = vunpack.c.l.b16 %v446
  %v540 = vunpack.c.h.b16 %v446
  %v541 = vpack.c.b16 %v511, %v509
  %v542 = vpack.c.b16 %v512, %v510
  %v543 = vpack.c.b16 %v515, %v513
  %v544 = vpack.c.b16 %v516, %v514
  %v545 = vpack.c.b16 %v519, %v517
  %v546 = vpack.c.b16 %v520, %v518
  %v547 = vpack.c.b16 %v523, %v521
  %v548 = vpack.c.b16 %v524, %v522
  %v549 = vpack.c.b16 %v527, %v525
  %v550 = vpack.c.b16 %v528, %v526
  %v551 = vpack.c.b16 %v531, %v529
  %v552 = vpack.c.b16 %v532, %v530
  %v553 = vpack.c.b16 %v535, %v533
  %v554 = vpack.c.b16 %v536, %v534
  %v555 = vpack.c.b16 %v539, %v537
  %v556 = vpack.c.b16 %v540, %v538
  %573 = vmatprep.subr.bf16.mxu0 %v542
  %574 = vmatpush1.bf16.msra.mxu0 %v541
  %575 = vmatprep.subr.bf16.mxu0 %v544
  %576 = vmatpush1.bf16.msra.mxu0 %v543
  %577 = vmatprep.subr.bf16.mxu0 %v546
  %578 = vmatpush1.bf16.msra.mxu0 %v545
  %579 = vmatprep.subr.bf16.mxu0 %v548
  %580 = vmatpush1.bf16.msra.mxu0 %v547
  %581 = vmatprep.subr.bf16.mxu0 %v550
  %582 = vmatpush1.bf16.msra.mxu0 %v549
  %583 = vmatprep.subr.bf16.mxu0 %v552
  %584 = vmatpush1.bf16.msra.mxu0 %v551
  %585 = vmatprep.subr.bf16.mxu0 %v554
  %586 = vmatpush1.bf16.msra.mxu0 %v553
  %587 = vmatprep.subr.bf16.mxu0 %v556
  %588 = vmatpush1.bf16.msra.mxu0 %v555
  %589 = vmatprep.subr.bf16.mxu0 0
  %590 = vmatpush1.bf16.msra.mxu0 0
  %591 = vmatprep.subr.bf16.mxu0 0
  %592 = vmatpush1.bf16.msra.mxu0 0
  %593 = vmatprep.subr.bf16.mxu0 0
  %594 = vmatpush1.bf16.msra.mxu0 0
  %595 = vmatprep.subr.bf16.mxu0 0
  %596 = vmatpush1.bf16.msra.mxu0 0
  %597 = vmatprep.subr.bf16.mxu0 0
  %598 = vmatpush1.bf16.msra.mxu0 0
  %599 = vmatprep.subr.bf16.mxu0 0
  %600 = vmatpush1.bf16.msra.mxu0 0
  %601 = vmatprep.subr.bf16.mxu0 0
  %602 = vmatpush1.bf16.msra.mxu0 0
  %603 = vmatprep.subr.bf16.mxu0 0
  %604 = vmatpush1.bf16.msra.mxu0 0
  %605 = vmatprep.mubr.bf16.mxu0 0
  %606 = vmatmul.mubr.bf16.gmra.mrb[0].mxu0 %v479
  %v607 = vpop.f32.mrb[0].mxu0
  %v608 = vadd.f32 %v486, %v607
  %v609 = vpop.f32.mrb[0].mxu0
  %v610 = vadd.f32 %v490, %v609
  %v611 = vpop.f32.mrb[0].mxu0
  %v612 = vpop.f32.mrb[0].mxu0
  %613 = vdwg.mxu0
  %v614 = vmax.f32 %v608, 0.0
  %v615 = vmax.f32 %v610, 0.0
  %v616 = vpack.c.bf16 %v614, %v614
  %v617 = vpack.c.bf16 %v615, %v615
  %s618 = scalar_lea.vmem %s6, 2
  %v619 = vld [vmem:[%s618] ss:$4 sm:$0x3]
  %v621 = vlaneseq
  %v622 = vshrl.u32 %v621, 7
  %v623 = vsub.s32 0, %v622
  %v624 = vrot.slane %v619, %v623
  %v625 = vlaneseq
  %v626 = vshrl.u32 %v625, 7
  %v627 = vsub.s32 1, %v626
  %v628 = vrot.slane %v619, %v627
  %v663 = vunpack.c.l.b16 %v447
  %v664 = vunpack.c.h.b16 %v447
  %v665 = vunpack.c.l.b16 %v448
  %v666 = vunpack.c.h.b16 %v448
  %v667 = vunpack.c.l.b16 %v449
  %v668 = vunpack.c.h.b16 %v449
  %v669 = vunpack.c.l.b16 %v450
  %v670 = vunpack.c.h.b16 %v450
  %v671 = vunpack.c.l.b16 %v451
  %v672 = vunpack.c.h.b16 %v451
  %v673 = vunpack.c.l.b16 %v452
  %v674 = vunpack.c.h.b16 %v452
  %v675 = vunpack.c.l.b16 %v453
  %v676 = vunpack.c.h.b16 %v453
  %v677 = vunpack.c.l.b16 %v454
  %v678 = vunpack.c.h.b16 %v454
  %v679 = vunpack.c.l.b16 %v455
  %v680 = vunpack.c.h.b16 %v455
  %v681 = vunpack.c.l.b16 %v456
  %v682 = vunpack.c.h.b16 %v456
  %v683 = vunpack.c.l.b16 %v457
  %v684 = vunpack.c.h.b16 %v457
  %v685 = vunpack.c.l.b16 %v458
  %v686 = vunpack.c.h.b16 %v458
  %v687 = vunpack.c.l.b16 %v459
  %v688 = vunpack.c.h.b16 %v459
  %v689 = vunpack.c.l.b16 %v460
  %v690 = vunpack.c.h.b16 %v460
  %v691 = vunpack.c.l.b16 %v461
  %v692 = vunpack.c.h.b16 %v461
  %v693 = vunpack.c.l.b16 %v462
  %v694 = vunpack.c.h.b16 %v462
  %v695 = vunpack.c.l.b16 %v463
  %v696 = vunpack.c.h.b16 %v463
  %v697 = vunpack.c.l.b16 %v464
  %v698 = vunpack.c.h.b16 %v464
  %v699 = vunpack.c.l.b16 %v465
  %v700 = vunpack.c.h.b16 %v465
  %v701 = vunpack.c.l.b16 %v466
  %v702 = vunpack.c.h.b16 %v466
  %v703 = vunpack.c.l.b16 %v467
  %v704 = vunpack.c.h.b16 %v467
  %v705 = vunpack.c.l.b16 %v468
  %v706 = vunpack.c.h.b16 %v468
  %v707 = vunpack.c.l.b16 %v469
  %v708 = vunpack.c.h.b16 %v469
  %v709 = vunpack.c.l.b16 %v470
  %v710 = vunpack.c.h.b16 %v470
  %v711 = vunpack.c.l.b16 %v471
  %v712 = vunpack.c.h.b16 %v471
  %v713 = vunpack.c.l.b16 %v472
  %v714 = vunpack.c.h.b16 %v472
  %v715 = vunpack.c.l.b16 %v473
  %v716 = vunpack.c.h.b16 %v473
  %v717 = vunpack.c.l.b16 %v474
  %v718 = vunpack.c.h.b16 %v474
  %v719 = vunpack.c.l.b16 %v475
  %v720 = vunpack.c.h.b16 %v475
  %v721 = vunpack.c.l.b16 %v476
  %v722 = vunpack.c.h.b16 %v476
  %v723 = vunpack.c.l.b16 %v477
  %v724 = vunpack.c.h.b16 %v477
  %v725 = vunpack.c.l.b16 %v478
  %v726 = vunpack.c.h.b16 %v478
  %v727 = vpack.c.b16 %v665, %v663
  %v728 = vpack.c.b16 %v666, %v664
  %v729 = vpack.c.b16 %v669, %v667
  %v730 = vpack.c.b16 %v670, %v668
  %v731 = vpack.c.b16 %v673, %v671
  %v732 = vpack.c.b16 %v674, %v672
  %v733 = vpack.c.b16 %v677, %v675
  %v734 = vpack.c.b16 %v678, %v676
  %v735 = vpack.c.b16 %v681, %v679
  %v736 = vpack.c.b16 %v682, %v680
  %v737 = vpack.c.b16 %v685, %v683
  %v738 = vpack.c.b16 %v686, %v684
  %v739 = vpack.c.b16 %v689, %v687
  %v740 = vpack.c.b16 %v690, %v688
  %v741 = vpack.c.b16 %v693, %v691
  %v742 = vpack.c.b16 %v694, %v692
  %v743 = vpack.c.b16 %v697, %v695
  %v744 = vpack.c.b16 %v698, %v696
  %v745 = vpack.c.b16 %v701, %v699
  %v746 = vpack.c.b16 %v702, %v700
  %v747 = vpack.c.b16 %v705, %v703
  %v748 = vpack.c.b16 %v706, %v704
  %v749 = vpack.c.b16 %v709, %v707
  %v750 = vpack.c.b16 %v710, %v708
  %v751 = vpack.c.b16 %v713, %v711
  %v752 = vpack.c.b16 %v714, %v712
  %v753 = vpack.c.b16 %v717, %v715
  %v754 = vpack.c.b16 %v718, %v716
  %v755 = vpack.c.b16 %v721, %v719
  %v756 = vpack.c.b16 %v722, %v720
  %v757 = vpack.c.b16 %v725, %v723
  %v758 = vpack.c.b16 %v726, %v724
  %791 = vmatprep.subr.bf16.mxu0 %v728
  %792 = vmatpush1.bf16.msra.mxu0 %v727
  %793 = vmatprep.subr.bf16.mxu0 %v730
  %794 = vmatpush1.bf16.msra.mxu0 %v729
  %795 = vmatprep.subr.bf16.mxu0 %v732
  %796 = vmatpush1.bf16.msra.mxu0 %v731
  %797 = vmatprep.subr.bf16.mxu0 %v734
  %798 = vmatpush1.bf16.msra.mxu0 %v733
  %799 = vmatprep.subr.bf16.mxu0 %v736
  %800 = vmatpush1.bf16.msra.mxu0 %v735
  %801 = vmatprep.subr.bf16.mxu0 %v738
  %802 = vmatpush1.bf16.msra.mxu0 %v737
  %803 = vmatprep.subr.bf16.mxu0 %v740
  %804 = vmatpush1.bf16.msra.mxu0 %v739
  %805 = vmatprep.subr.bf16.mxu0 %v742
  %806 = vmatpush1.bf16.msra.mxu0 %v741
  %807 = vmatprep.subr.bf16.mxu0 %v744
  %808 = vmatpush1.bf16.msra.mxu0 %v743
  %809 = vmatprep.subr.bf16.mxu0 %v746
  %810 = vmatpush1.bf16.msra.mxu0 %v745
  %811 = vmatprep.subr.bf16.mxu0 %v748
  %812 = vmatpush1.bf16.msra.mxu0 %v747
  %813 = vmatprep.subr.bf16.mxu0 %v750
  %814 = vmatpush1.bf16.msra.mxu0 %v749
  %815 = vmatprep.subr.bf16.mxu0 %v752
  %816 = vmatpush1.bf16.msra.mxu0 %v751
  %817 = vmatprep.subr.bf16.mxu0 %v754
  %818 = vmatpush1.bf16.msra.mxu0 %v753
  %819 = vmatprep.subr.bf16.mxu0 %v756
  %820 = vmatpush1.bf16.msra.mxu0 %v755
  %821 = vmatprep.subr.bf16.mxu0 %v758
  %822 = vmatpush1.bf16.msra.mxu0 %v757
  %823 = vmatprep.mubr.bf16.mxu0 %v617
  %824 = vmatmul.mubr.bf16.gmra.mrb[0].mxu0 %v616
  %v825 = vpop.f32.mrb[0].mxu0
  %v826 = vadd.f32 %v624, %v825
  %v827 = vpop.f32.mrb[0].mxu0
  %v828 = vadd.f32 %v628, %v827
  %v829 = vpop.f32.mrb[0].mxu0
  %v830 = vpop.f32.mrb[0].mxu0
  %831 = vdwg.mxu0
  %v832 = vmax.f32 %v826, 0.0
  %v833 = vmax.f32 %v828, 0.0
  %v834 = vpack.c.bf16 %v832, %v832
  %v835 = vpack.c.bf16 %v833, %v833
  %v836 = vld [vmem:[%s5] sm:$0xf]
  %v837 = vld [vmem:[%s5 + $0x4] sm:$0xf]
  %v838 = vld [vmem:[%s5 + $0x8] sm:$0xf]
  %v839 = vld [vmem:[%s5 + $0xc] sm:$0xf]
  %v840 = vld [vmem:[%s5 + $0x10] sm:$0xf]
  %v841 = vld [vmem:[%s5 + $0x14] sm:$0xf]
  %v842 = vld [vmem:[%s5 + $0x18] sm:$0xf]
  %v843 = vld [vmem:[%s5 + $0x1c] sm:$0xf]
  %v844 = vld [vmem:[%s5 + $0x20] sm:$0xf]
  %v845 = vld [vmem:[%s5 + $0x24] sm:$0xf]
  %v846 = vld [vmem:[%s5 + $0x28] sm:$0xf]
  %v847 = vld [vmem:[%s5 + $0x2c] sm:$0xf]
  %v848 = vld [vmem:[%s5 + $0x30] sm:$0xf]
  %v849 = vld [vmem:[%s5 + $0x34] sm:$0xf]
  %v850 = vld [vmem:[%s5 + $0x38] sm:$0xf]
  %v851 = vld [vmem:[%s5 + $0x3c] sm:$0xf]
  %v852 = vld [vmem:[%s5 + $0x40] sm:$0xf]
  %v853 = vld [vmem:[%s5 + $0x44] sm:$0xf]
  %v854 = vld [vmem:[%s5 + $0x48] sm:$0xf]
  %v855 = vld [vmem:[%s5 + $0x4c] sm:$0xf]
  %v856 = vld [vmem:[%s5 + $0x50] sm:$0xf]
  %v857 = vld [vmem:[%s5 + $0x54] sm:$0xf]
  %v858 = vld [vmem:[%s5 + $0x58] sm:$0xf]
  %v859 = vld [vmem:[%s5 + $0x5c] sm:$0xf]
  %v860 = vld [vmem:[%s5 + $0x60] sm:$0xf]
  %v861 = vld [vmem:[%s5 + $0x64] sm:$0xf]
  %v862 = vld [vmem:[%s5 + $0x68] sm:$0xf]
  %v863 = vld [vmem:[%s5 + $0x6c] sm:$0xf]
  %v864 = vld [vmem:[%s5 + $0x70] sm:$0xf]
  %v865 = vld [vmem:[%s5 + $0x74] sm:$0xf]
  %v866 = vld [vmem:[%s5 + $0x78] sm:$0xf]
  %v867 = vld [vmem:[%s5 + $0x7c] sm:$0xf]
  %v868 = vld [vmem:[%s6 + $0x3] sm:$0x1]
  %v869 = vlaneseq
  %v870 = vshrl.u32 %v869, 7
  %v871 = vsub.s32 0, %v870
  %v872 = vrot.slane %v868, %v871
  %v905 = vunpack.c.l.b16 %v836
  %v906 = vunpack.c.l.b16 %v837
  %v907 = vunpack.c.l.b16 %v838
  %v908 = vunpack.c.l.b16 %v839
  %v909 = vunpack.c.l.b16 %v840
  %v910 = vunpack.c.l.b16 %v841
  %v911 = vunpack.c.l.b16 %v842
  %v912 = vunpack.c.l.b16 %v843
  %v913 = vunpack.c.l.b16 %v844
  %v914 = vunpack.c.l.b16 %v845
  %v915 = vunpack.c.l.b16 %v846
  %v916 = vunpack.c.l.b16 %v847
  %v917 = vunpack.c.l.b16 %v848
  %v918 = vunpack.c.l.b16 %v849
  %v919 = vunpack.c.l.b16 %v850
  %v920 = vunpack.c.l.b16 %v851
  %v921 = vunpack.c.l.b16 %v852
  %v922 = vunpack.c.l.b16 %v853
  %v923 = vunpack.c.l.b16 %v854
  %v924 = vunpack.c.l.b16 %v855
  %v925 = vunpack.c.l.b16 %v856
  %v926 = vunpack.c.l.b16 %v857
  %v927 = vunpack.c.l.b16 %v858
  %v928 = vunpack.c.l.b16 %v859
  %v929 = vunpack.c.l.b16 %v860
  %v930 = vunpack.c.l.b16 %v861
  %v931 = vunpack.c.l.b16 %v862
  %v932 = vunpack.c.l.b16 %v863
  %v933 = vunpack.c.l.b16 %v864
  %v934 = vunpack.c.l.b16 %v865
  %v935 = vunpack.c.l.b16 %v866
  %v936 = vunpack.c.l.b16 %v867
  %v937 = vpack.c.b16 %v906, %v905
  %v938 = vpack.c.b16 %v908, %v907
  %v939 = vpack.c.b16 %v910, %v909
  %v940 = vpack.c.b16 %v912, %v911
  %v941 = vpack.c.b16 %v914, %v913
  %v942 = vpack.c.b16 %v916, %v915
  %v943 = vpack.c.b16 %v918, %v917
  %v944 = vpack.c.b16 %v920, %v919
  %v945 = vpack.c.b16 %v922, %v921
  %v946 = vpack.c.b16 %v924, %v923
  %v947 = vpack.c.b16 %v926, %v925
  %v948 = vpack.c.b16 %v928, %v927
  %v949 = vpack.c.b16 %v930, %v929
  %v950 = vpack.c.b16 %v932, %v931
  %v951 = vpack.c.b16 %v934, %v933
  %v952 = vpack.c.b16 %v936, %v935
  %969 = vmatprep.subr.bf16.mxu0 0
  %970 = vmatpush1.bf16.msra.mxu0 %v937
  %971 = vmatprep.subr.bf16.mxu0 0
  %972 = vmatpush1.bf16.msra.mxu0 %v938
  %973 = vmatprep.subr.bf16.mxu0 0
  %974 = vmatpush1.bf16.msra.mxu0 %v939
  %975 = vmatprep.subr.bf16.mxu0 0
  %976 = vmatpush1.bf16.msra.mxu0 %v940
  %977 = vmatprep.subr.bf16.mxu0 0
  %978 = vmatpush1.bf16.msra.mxu0 %v941
  %979 = vmatprep.subr.bf16.mxu0 0
  %980 = vmatpush1.bf16.msra.mxu0 %v942
  %981 = vmatprep.subr.bf16.mxu0 0
  %982 = vmatpush1.bf16.msra.mxu0 %v943
  %983 = vmatprep.subr.bf16.mxu0 0
  %984 = vmatpush1.bf16.msra.mxu0 %v944
  %985 = vmatprep.subr.bf16.mxu0 0
  %986 = vmatpush1.bf16.msra.mxu0 %v945
  %987 = vmatprep.subr.bf16.mxu0 0
  %988 = vmatpush1.bf16.msra.mxu0 %v946
  %989 = vmatprep.subr.bf16.mxu0 0
  %990 = vmatpush1.bf16.msra.mxu0 %v947
  %991 = vmatprep.subr.bf16.mxu0 0
  %992 = vmatpush1.bf16.msra.mxu0 %v948
  %993 = vmatprep.subr.bf16.mxu0 0
  %994 = vmatpush1.bf16.msra.mxu0 %v949
  %995 = vmatprep.subr.bf16.mxu0 0
  %996 = vmatpush1.bf16.msra.mxu0 %v950
  %997 = vmatprep.subr.bf16.mxu0 0
  %998 = vmatpush1.bf16.msra.mxu0 %v951
  %999 = vmatprep.subr.bf16.mxu0 0
  %1000 = vmatpush1.bf16.msra.mxu0 %v952
  %1001 = vmatprep.mubr.bf16.mxu0 %v835
  %1002 = vmatmul.mubr.bf16.gmra.mrb[0].mxu0 %v834
  %v1003 = vpop.f32.mrb[0].mxu0
  %v1004 = vadd.f32 %v872, %v1003
  %v1005 = vpop.f32.mrb[0].mxu0
  %v1006 = vpop.f32.mrb[0].mxu0
  %v1007 = vpop.f32.mrb[0].mxu0
  %1008 = vdwg.mxu0
  %1009 = vst [vmem:[%s7] sm:$0xff] %v1004
  // Predicated region
  $region30: #{dann_forward.1} parent=0 // pred_check
    _
  $region31: #{dann_forward.1} parent=0 // pred_check_branch
    %1011 = sbr.rel (0) target = $region33
  $region32: #{dann_forward.1} parent=0 // pred_region
    _
  $region33: #{dann_forward.1} parent=0 // pred_fallthru
    _
  // Predicated region
  $region34: #{dann_forward.1} parent=0 // pred_check
    _
  $region35: #{dann_forward.1} parent=0 // pred_check_branch
    %1013 = sbr.rel (0) target = $region37
  $region36: #{dann_forward.1} parent=0 // pred_region
    _
  $region37: #{dann_forward.1} parent=0 // pred_fallthru
    _

</llo_original>
